<compile_context>
chip_gen: v5e
topology: v5e:2x2
jax: 0.10.0
libtpu: 0.0.40
codegen_flags: <defaults>
</compile_context>

<pallas_src>
import jax
import jax.numpy as jnp
from jax import lax
from jax.experimental import pallas as pl
from jax.experimental.pallas import tpu as pltpu

GLOVE_DIM = 50  # nn.Linear(50, embed_dim) in the reference module


def _round_up(x: int, m: int) -> int:
    return ((x + m - 1) // m) * m


def _instruction_encoder_kernel(tok_ref, wt_ref, b_ref, out_ref):
    # tok_ref: [TM, 1] int32  (tokens, sublane-major)
    # wt_ref : [V, E]  f32    (fused emb @ W_linear, resident stationary RHS)
    # b_ref  : [1, E]  f32    (Linear bias, resident)
    # out_ref: [TM, E] f32    (token-major tile -> final [B,S,E] is a reshape)
    tok = tok_ref[...]                                        # [TM, 1]
    v = wt_ref.shape[0]
    tm = tok.shape[0]

    # One-hot gather of fused-table rows via a single MXU matmul.
    # Lane-axis iota (vocab along lanes) + sublane broadcast of the token ids.
    # (Out-of-range / negative token ids select nothing -> bias-only row,
    #  unlike torch.nn.Embedding which errors; clamp upstream if possible.)
    vocab_iota = lax.broadcasted_iota(jnp.int32, (tm, v), 1)  # [TM, V]
    onehot = (vocab_iota == tok).astype(jnp.float32)          # [TM, V]

    out = jnp.dot(onehot, wt_ref[...],
                  preferred_element_type=jnp.float32)         # [TM, E]
    out_ref[...] = (out + b_ref[...]).astype(out_ref.dtype)


def precompute_fused_table(embedding_table, map_w):
    """One-time fusion of the frozen Embedding with the Linear weight.

    embedding_table: [V, 50], map_w: [50, E] (in x out) -> fused [V, E].
    Call once at init (the embedding is frozen); the forward pass only
    consumes the fused table.
    """
    return embedding_table.astype(jnp.float32) @ map_w.astype(jnp.float32)


def instruction_encoder_forward(tokens, w_fused, map_b, *, tm=2048):
    """tokens: [B, S] int; w_fused: [V, E] (pre-fused emb @ W); map_b: [E].
    Returns [B, S, E] float32."""
    B, S = tokens.shape
    V, E = w_fused.shape
    N = B * S

    # ---- tile the token axis (sublane-major), keep tiles 128-aligned ----
    n_pad0 = _round_up(N, 128)
    tm_req = max(128, _round_up(int(tm), 128))
    num_tiles = max(1, -(-n_pad0 // tm_req))
    if num_tiles == 1 and n_pad0 >= 256:
        num_tiles = 2                       # v7x megacore: feed both TCs
    tm = _round_up(-(-n_pad0 // num_tiles), 128)
    n_pad = tm * num_tiles

    tok_col = tokens.astype(jnp.int32).reshape(N, 1)
    if n_pad != N:
        # pad with token 0 (PAD row); padded rows are sliced off below.
        tok_col = jnp.pad(tok_col, ((0, n_pad - N), (0, 0)))

    bias = map_b.astype(jnp.float32).reshape(1, E)

    # Honest cost: gather + Linear, not the artificial one-hot contraction.
    cost = pl.CostEstimate(
        flops=2 * N * GLOVE_DIM * E,
        transcendentals=0,
        bytes_accessed=(n_pad * 4 + V * E * 4 + E * 4 + n_pad * E * 4),
    )

    out = pl.pallas_call(
        _instruction_encoder_kernel,
        out_shape=jax.ShapeDtypeStruct((n_pad, E), jnp.float32),
        grid=(num_tiles,),
        in_specs=[
            pl.BlockSpec((tm, 1), lambda i: (i, 0)),   # tokens: tiled over N
            pl.BlockSpec((V, E), lambda i: (0, 0)),    # fused table: resident
            pl.BlockSpec((1, E), lambda i: (0, 0)),    # bias: resident
        ],
        out_specs=pl.BlockSpec((tm, E), lambda i: (i, 0)),
        compiler_params=pltpu.CompilerParams(
            dimension_semantics=("parallel",)),        # megacore split on v7x
        cost_estimate=cost,
    )(tok_col, w_fused, bias)

    # Contiguous row slice + reshape only; no transpose / extra HBM pass.
    if n_pad != N:
        out = out[:N]
    return out.reshape(B, S, E)


def reference_forward(tokens, embedding_table, map_w, map_b):
    emb = jnp.take(embedding_table, tokens.astype(jnp.int32), axis=0)  # [B,S,50]
    return emb @ map_w + map_b


if __name__ == "__main__":
    key = jax.random.PRNGKey(0)
    k_emb, k_w, k_b, k_tok = jax.random.split(key, 4)

    # Small, module-consistent shapes.
    batch, seq = 2, 8
    vocab, glove_dim, embed_dim = 64, GLOVE_DIM, 32

    # Deterministic synthetic "pretrained" embedding table:
    # PAD row (index 0) is zeros, UNK row (index 1) is the mean of the rest.
    emb_body = jax.random.normal(k_emb, (vocab, glove_dim), dtype=jnp.float32)
    emb_body = emb_body.at[0].set(0.0)
    emb_body = emb_body.at[1].set(jnp.mean(emb_body[2:], axis=0))
    embedding_table = emb_body

    # map_layer params (Linear(50, embed_dim)); stored as [in, out].
    map_w = jax.random.normal(k_w, (glove_dim, embed_dim), dtype=jnp.float32) * 0.1
    map_b = jax.random.normal(k_b, (embed_dim,), dtype=jnp.float32) * 0.1

    tokens = jax.random.randint(k_tok, (batch, seq), 0, vocab, dtype=jnp.int32)

    # One-time fusion of the frozen embedding with the Linear weight.
    w_fused = precompute_fused_table(embedding_table, map_w)
    w_fused = jax.block_until_ready(w_fused)

    out = instruction_encoder_forward(tokens, w_fused, map_b)
    out = jax.block_until_ready(out)

    ref = reference_forward(tokens, embedding_table, map_w, map_b)
    assert out.shape == (batch, seq, embed_dim)
    assert jnp.allclose(out, ref, atol=1e-4, rtol=1e-4), "mismatch vs reference"

    print("KERNEL_OK")
</pallas_src>

<mosaic_0001>
module attributes {stable_mosaic.version = 11 : i64} {
  func.func @_instruction_encoder_kernel(%arg0: i32, %arg1: memref<128x1xi32, #tpu.memory_space<vmem>>, %arg2: memref<64x32xf32, #tpu.memory_space<vmem>>, %arg3: memref<1x32xf32, #tpu.memory_space<vmem>>, %arg4: memref<128x32xf32, #tpu.memory_space<vmem>>) attributes {dimension_semantics = [#tpu.dimension_semantics<parallel>], iteration_bounds = array<i64: 1>, scalar_prefetch = 0 : i64, scratch_operands = 0 : i64, tpu.core_type = #tpu.core_type<tc>, window_params = [{transform_indices = @transform_0, window_bounds = array<i64: 128, 1>}, {pipeline_mode = #tpu.pipeline_mode<synchronous>, transform_indices = @transform_1, window_bounds = array<i64: 64, 32>}, {pipeline_mode = #tpu.pipeline_mode<synchronous>, transform_indices = @transform_2, window_bounds = array<i64: 1, 32>}, {transform_indices = @transform_3, window_bounds = array<i64: 128, 32>}]} {
    %c0 = arith.constant 0 : index
    %c0_0 = arith.constant 0 : index
    %0 = vector.load %arg1[%c0, %c0_0] : memref<128x1xi32, #tpu.memory_space<vmem>>, vector<128x1xi32>
    %1 = tpu.iota {dimensions = array<i32: 1>} : vector<128x64xi32>
    %2 = vector.broadcast %0 : vector<128x1xi32> to vector<128x64xi32>
    %3 = arith.cmpi eq, %1, %2 : vector<128x64xi32>
    %4 = arith.extui %3 : vector<128x64xi1> to vector<128x64xi32>
    %5 = arith.sitofp %4 : vector<128x64xi32> to vector<128x64xf32>
    %c0_1 = arith.constant 0 : index
    %c0_2 = arith.constant 0 : index
    %6 = vector.load %arg2[%c0_1, %c0_2] : memref<64x32xf32, #tpu.memory_space<vmem>>, vector<64x32xf32>
    %cst = arith.constant dense<0.000000e+00> : vector<128x32xf32>
    %7 = tpu.matmul %5, %6, %cst {dimension_numbers = #tpu.dot_dimension_numbers<[1], [0], [0], [1], [0, 0, 1, 1], [], []>} : vector<128x64xf32>, vector<64x32xf32>, vector<128x32xf32> -> vector<128x32xf32>
    %c0_3 = arith.constant 0 : index
    %c0_4 = arith.constant 0 : index
    %8 = vector.load %arg3[%c0_3, %c0_4] : memref<1x32xf32, #tpu.memory_space<vmem>>, vector<1x32xf32>
    %9 = vector.broadcast %8 : vector<1x32xf32> to vector<128x32xf32>
    %10 = arith.addf %7, %9 : vector<128x32xf32>
    %c0_5 = arith.constant 0 : index
    %c0_6 = arith.constant 0 : index
    %11 = vector.load %arg4[%c0_5, %c0_6] : memref<128x32xf32, #tpu.memory_space<vmem>>, vector<128x32xf32>
    tpu.vector_store %arg4[%c0_5, %c0_6], %10 {strides = array<i32>} : memref<128x32xf32, #tpu.memory_space<vmem>>, vector<128x32xf32>,
    return
  }
  func.func @transform_0(%arg0: i32) -> (i32, i32) {
    %c0_i32 = arith.constant 0 : i32
    %c0_i32_0 = arith.constant 0 : i32
    return %arg0, %c0_i32 : i32, i32
  }
  func.func @transform_1(%arg0: i32) -> (i32, i32) {
    %c0_i32 = arith.constant 0 : i32
    %c0_i32_0 = arith.constant 0 : i32
    %c0_i32_1 = arith.constant 0 : i32
    return %c0_i32, %c0_i32_0 : i32, i32
  }
  func.func @transform_2(%arg0: i32) -> (i32, i32) {
    %c0_i32 = arith.constant 0 : i32
    %c0_i32_0 = arith.constant 0 : i32
    %c0_i32_1 = arith.constant 0 : i32
    return %c0_i32, %c0_i32_0 : i32, i32
  }
  func.func @transform_3(%arg0: i32) -> (i32, i32) {
    %c0_i32 = arith.constant 0 : i32
    %c0_i32_0 = arith.constant 0 : i32
    return %arg0, %c0_i32 : i32, i32
  }
}

</mosaic_0001>

<llo_original>
// kernel: tpu_custom_call.1
$region0: #{tpu_custom_call.1}
  #allocation0 [shape = 'u32[]', space=smem, size = 0x4, offset = 0x4, fixed_abs, tag = 'smem constant byte address 0x4 - core index']
  #allocation1 [shape = 'u32[72,128]{1,0:T(1,128)}', space=vmem, size = 0x9000, scoped, tag = 'internal scratch']
  %s0 = inlined_call_operand.vmem [shape: s32[128,1], index: 0, kind: input, shape index: {}]
  %s1 = inlined_call_operand.vmem [shape: f32[64,32], index: 1, kind: input, shape index: {}]
  %s2 = inlined_call_operand.vmem [shape: f32[1,32], index: 2, kind: input, shape index: {}]
  %s3 = inlined_call_operand.vmem [shape: f32[128,32], index: 3, kind: output, shape index: {}]
  %s4 = sld [smem:[#allocation0]]
  $region22: #{tpu_custom_call.1} parent=0
    _
  %s6 = ssub.s32 1, %s4
  %s7 = scalar_select 0, %s6, %s4
  // Predicated region
  $region2: #{tpu_custom_call.1} parent=0 // pred_check
    _
  $region3: #{tpu_custom_call.1} parent=0 // pred_check_branch
    %9 = sbr.rel (0) target = $region5
  $region4: #{tpu_custom_call.1} parent=0 // pred_region
    _
  $region5: #{tpu_custom_call.1} parent=0 // pred_fallthru
    _
  // Predicated region
  $region6: #{tpu_custom_call.1} parent=0 // pred_check
    _
  $region7: #{tpu_custom_call.1} parent=0 // pred_check_branch
    %11 = sbr.rel (0) target = $region9
  $region8: #{tpu_custom_call.1} parent=0 // pred_region
    _
  $region9: #{tpu_custom_call.1} parent=0 // pred_fallthru
    _
  // Predicated region
  $region10: #{tpu_custom_call.1} parent=0 // pred_check
    _
  $region11: #{tpu_custom_call.1} parent=0 // pred_check_branch
    %13 = sbr.rel (0) target = $region13
  $region12: #{tpu_custom_call.1} parent=0 // pred_region
    _
  $region13: #{tpu_custom_call.1} parent=0 // pred_fallthru
    _
  %v14 = vld [vmem:[%s0] sm:$0xff]
  %v15 = vld [vmem:[%s0 + $0x8] sm:$0xff]
  %v16 = vld [vmem:[%s0 + $0x10] sm:$0xff]
  %v17 = vld [vmem:[%s0 + $0x18] sm:$0xff]
  %v18 = vld [vmem:[%s0 + $0x20] sm:$0xff]
  %v19 = vld [vmem:[%s0 + $0x28] sm:$0xff]
  %v20 = vld [vmem:[%s0 + $0x30] sm:$0xff]
  %v21 = vld [vmem:[%s0 + $0x38] sm:$0xff]
  %v22 = vld [vmem:[%s0 + $0x40] sm:$0xff]
  %v23 = vld [vmem:[%s0 + $0x48] sm:$0xff]
  %v24 = vld [vmem:[%s0 + $0x50] sm:$0xff]
  %v25 = vld [vmem:[%s0 + $0x58] sm:$0xff]
  %v26 = vld [vmem:[%s0 + $0x60] sm:$0xff]
  %v27 = vld [vmem:[%s0 + $0x68] sm:$0xff]
  %v28 = vld [vmem:[%s0 + $0x70] sm:$0xff]
  %v29 = vld [vmem:[%s0 + $0x78] sm:$0xff]
  %v30 = vlaneseq
  %v31 = vand.u32 %v30, 127
  %32 = vset.pattern.permute.xlu0 0
  %33 = vperm.xlu0 %32, %v14
  %v34 = vpop.permute.xlu0 %33
  %35 = vset.pattern.permute.xlu0 0
  %36 = vperm.xlu0 %35, %v15
  %v37 = vpop.permute.xlu0 %36
  %38 = vset.pattern.permute.xlu0 0
  %39 = vperm.xlu0 %38, %v16
  %v40 = vpop.permute.xlu0 %39
  %41 = vset.pattern.permute.xlu0 0
  %42 = vperm.xlu0 %41, %v17
  %v43 = vpop.permute.xlu0 %42
  %44 = vset.pattern.permute.xlu0 0
  %45 = vperm.xlu0 %44, %v18
  %v46 = vpop.permute.xlu0 %45
  %47 = vset.pattern.permute.xlu0 0
  %48 = vperm.xlu0 %47, %v19
  %v49 = vpop.permute.xlu0 %48
  %50 = vset.pattern.permute.xlu0 0
  %51 = vperm.xlu0 %50, %v20
  %v52 = vpop.permute.xlu0 %51
  %53 = vset.pattern.permute.xlu0 0
  %54 = vperm.xlu0 %53, %v21
  %v55 = vpop.permute.xlu0 %54
  %56 = vset.pattern.permute.xlu0 0
  %57 = vperm.xlu0 %56, %v22
  %v58 = vpop.permute.xlu0 %57
  %59 = vset.pattern.permute.xlu0 0
  %60 = vperm.xlu0 %59, %v23
  %v61 = vpop.permute.xlu0 %60
  %62 = vset.pattern.permute.xlu0 0
  %63 = vperm.xlu0 %62, %v24
  %v64 = vpop.permute.xlu0 %63
  %65 = vset.pattern.permute.xlu0 0
  %66 = vperm.xlu0 %65, %v25
  %v67 = vpop.permute.xlu0 %66
  %68 = vset.pattern.permute.xlu0 0
  %69 = vperm.xlu0 %68, %v26
  %v70 = vpop.permute.xlu0 %69
  %71 = vset.pattern.permute.xlu0 0
  %72 = vperm.xlu0 %71, %v27
  %v73 = vpop.permute.xlu0 %72
  %74 = vset.pattern.permute.xlu0 0
  %75 = vperm.xlu0 %74, %v28
  %v76 = vpop.permute.xlu0 %75
  %77 = vset.pattern.permute.xlu0 0
  %78 = vperm.xlu0 %77, %v29
  %v79 = vpop.permute.xlu0 %78
  %vm80 = vcmp.eq.s32.totalorder %v31, %v34
  %vm81 = vcmp.eq.s32.totalorder %v31, %v37
  %vm82 = vcmp.eq.s32.totalorder %v31, %v40
  %vm83 = vcmp.eq.s32.totalorder %v31, %v43
  %vm84 = vcmp.eq.s32.totalorder %v31, %v46
  %vm85 = vcmp.eq.s32.totalorder %v31, %v49
  %vm86 = vcmp.eq.s32.totalorder %v31, %v52
  %vm87 = vcmp.eq.s32.totalorder %v31, %v55
  %vm88 = vcmp.eq.s32.totalorder %v31, %v58
  %vm89 = vcmp.eq.s32.totalorder %v31, %v61
  %vm90 = vcmp.eq.s32.totalorder %v31, %v64
  %vm91 = vcmp.eq.s32.totalorder %v31, %v67
  %vm92 = vcmp.eq.s32.totalorder %v31, %v70
  %vm93 = vcmp.eq.s32.totalorder %v31, %v73
  %vm94 = vcmp.eq.s32.totalorder %v31, %v76
  %vm95 = vcmp.eq.s32.totalorder %v31, %v79
  %v96 = vsel %vm80, 1, 0
  %v97 = vsel %vm81, 1, 0
  %v98 = vsel %vm82, 1, 0
  %v99 = vsel %vm83, 1, 0
  %v100 = vsel %vm84, 1, 0
  %v101 = vsel %vm85, 1, 0
  %v102 = vsel %vm86, 1, 0
  %v103 = vsel %vm87, 1, 0
  %v104 = vsel %vm88, 1, 0
  %v105 = vsel %vm89, 1, 0
  %v106 = vsel %vm90, 1, 0
  %v107 = vsel %vm91, 1, 0
  %v108 = vsel %vm92, 1, 0
  %v109 = vsel %vm93, 1, 0
  %v110 = vsel %vm94, 1, 0
  %v111 = vsel %vm95, 1, 0
  %v112 = vcvt.s32.f32 %v96
  %v113 = vcvt.s32.f32 %v97
  %v114 = vcvt.s32.f32 %v98
  %v115 = vcvt.s32.f32 %v99
  %v116 = vcvt.s32.f32 %v100
  %v117 = vcvt.s32.f32 %v101
  %v118 = vcvt.s32.f32 %v102
  %v119 = vcvt.s32.f32 %v103
  %v120 = vcvt.s32.f32 %v104
  %v121 = vcvt.s32.f32 %v105
  %v122 = vcvt.s32.f32 %v106
  %v123 = vcvt.s32.f32 %v107
  %v124 = vcvt.s32.f32 %v108
  %v125 = vcvt.s32.f32 %v109
  %v126 = vcvt.s32.f32 %v110
  %v127 = vcvt.s32.f32 %v111
  %v128 = vld [vmem:[%s1] sm:$0xff]
  %v129 = vld [vmem:[%s1 + $0x8] sm:$0xff]
  %v130 = vld [vmem:[%s1 + $0x10] sm:$0xff]
  %v131 = vld [vmem:[%s1 + $0x18] sm:$0xff]
  %v132 = vld [vmem:[%s1 + $0x20] sm:$0xff]
  %v133 = vld [vmem:[%s1 + $0x28] sm:$0xff]
  %v134 = vld [vmem:[%s1 + $0x30] sm:$0xff]
  %v135 = vld [vmem:[%s1 + $0x38] sm:$0xff]
  %v136 = vld [vmem:[%s2] sm:$0x1]
  %v138 = vperm.slane %v136, 0
  %vm140 = vcmask 523264
  %v142 = vsel %vm140, %v112, 0
  %v145 = vsel %vm140, %v113, 0
  %v148 = vsel %vm140, %v114, 0
  %v151 = vsel %vm140, %v115, 0
  %v154 = vsel %vm140, %v116, 0
  %v157 = vsel %vm140, %v117, 0
  %v160 = vsel %vm140, %v118, 0
  %v163 = vsel %vm140, %v119, 0
  %v166 = vsel %vm140, %v120, 0
  %v169 = vsel %vm140, %v121, 0
  %v172 = vsel %vm140, %v122, 0
  %v175 = vsel %vm140, %v123, 0
  %v178 = vsel %vm140, %v124, 0
  %v181 = vsel %vm140, %v125, 0
  %v184 = vsel %vm140, %v126, 0
  %v187 = vsel %vm140, %v127, 0
  %189 = vmatpush.msra.mxu0 0.0
  %190 = vmatpush.msra.mxu0 0.0
  %191 = vmatpush.msra.mxu0 0.0
  %192 = vmatpush.msra.mxu0 0.0
  %193 = vmatpush.msra.mxu0 0.0
  %194 = vmatpush.msra.mxu0 0.0
  %195 = vmatpush.msra.mxu0 0.0
  %196 = vmatpush.msra.mxu0 0.0
  %197 = vmatpush.msra.mxu0 %v135
  %198 = vmatpush.msra.mxu0 %v134
  %199 = vmatpush.msra.mxu0 %v133
  %200 = vmatpush.msra.mxu0 %v132
  %201 = vmatpush.msra.mxu0 %v131
  %202 = vmatpush.msra.mxu0 %v130
  %203 = vmatpush.msra.mxu0 %v129
  %204 = vmatpush.msra.mxu0 %v128
  %205 = vmatmul.f32.gmra.mxu0 %v142
  %v206 = vpop.f32.mrf.mxu0
  %v207 = vadd.f32 %v138, %v206
  %208 = vmatmul.f32.gmra.mxu0 %v145
  %v209 = vpop.f32.mrf.mxu0
  %v210 = vadd.f32 %v138, %v209
  %211 = vmatmul.f32.gmra.mxu0 %v148
  %v212 = vpop.f32.mrf.mxu0
  %v213 = vadd.f32 %v138, %v212
  %214 = vmatmul.f32.gmra.mxu0 %v151
  %v215 = vpop.f32.mrf.mxu0
  %v216 = vadd.f32 %v138, %v215
  %217 = vmatmul.f32.gmra.mxu0 %v154
  %v218 = vpop.f32.mrf.mxu0
  %v219 = vadd.f32 %v138, %v218
  %220 = vmatmul.f32.gmra.mxu0 %v157
  %v221 = vpop.f32.mrf.mxu0
  %v222 = vadd.f32 %v138, %v221
  %223 = vmatmul.f32.gmra.mxu0 %v160
  %v224 = vpop.f32.mrf.mxu0
  %v225 = vadd.f32 %v138, %v224
  %226 = vmatmul.f32.gmra.mxu0 %v163
  %v227 = vpop.f32.mrf.mxu0
  %v228 = vadd.f32 %v138, %v227
  %229 = vmatmul.f32.gmra.mxu0 %v166
  %v230 = vpop.f32.mrf.mxu0
  %v231 = vadd.f32 %v138, %v230
  %232 = vmatmul.f32.gmra.mxu0 %v169
  %v233 = vpop.f32.mrf.mxu0
  %v234 = vadd.f32 %v138, %v233
  %235 = vmatmul.f32.gmra.mxu0 %v172
  %v236 = vpop.f32.mrf.mxu0
  %v237 = vadd.f32 %v138, %v236
  %238 = vmatmul.f32.gmra.mxu0 %v175
  %v239 = vpop.f32.mrf.mxu0
  %v240 = vadd.f32 %v138, %v239
  %241 = vmatmul.f32.gmra.mxu0 %v178
  %v242 = vpop.f32.mrf.mxu0
  %v243 = vadd.f32 %v138, %v242
  %244 = vmatmul.f32.gmra.mxu0 %v181
  %v245 = vpop.f32.mrf.mxu0
  %v246 = vadd.f32 %v138, %v245
  %247 = vmatmul.f32.gmra.mxu0 %v184
  %v248 = vpop.f32.mrf.mxu0
  %v249 = vadd.f32 %v138, %v248
  %250 = vmatmul.f32.gmra.mxu0 %v187
  %v251 = vpop.f32.mrf.mxu0
  %v252 = vadd.f32 %v138, %v251
  %253 = vdwg.mxu0
  %vm254 = vcmask 261120
  %255 = vst.msk [vmem:[%s3] sm:$0xff] %vm254, %v207
  %256 = vst.msk [vmem:[%s3 + $0x8] sm:$0xff] %vm254, %v210
  %257 = vst.msk [vmem:[%s3 + $0x10] sm:$0xff] %vm254, %v213
  %258 = vst.msk [vmem:[%s3 + $0x18] sm:$0xff] %vm254, %v216
  %259 = vst.msk [vmem:[%s3 + $0x20] sm:$0xff] %vm254, %v219
  %260 = vst.msk [vmem:[%s3 + $0x28] sm:$0xff] %vm254, %v222
  %261 = vst.msk [vmem:[%s3 + $0x30] sm:$0xff] %vm254, %v225
  %262 = vst.msk [vmem:[%s3 + $0x38] sm:$0xff] %vm254, %v228
  %263 = vst.msk [vmem:[%s3 + $0x40] sm:$0xff] %vm254, %v231
  %264 = vst.msk [vmem:[%s3 + $0x48] sm:$0xff] %vm254, %v234
  %265 = vst.msk [vmem:[%s3 + $0x50] sm:$0xff] %vm254, %v237
  %266 = vst.msk [vmem:[%s3 + $0x58] sm:$0xff] %vm254, %v240
  %267 = vst.msk [vmem:[%s3 + $0x60] sm:$0xff] %vm254, %v243
  %268 = vst.msk [vmem:[%s3 + $0x68] sm:$0xff] %vm254, %v246
  %269 = vst.msk [vmem:[%s3 + $0x70] sm:$0xff] %vm254, %v249
  %270 = vst.msk [vmem:[%s3 + $0x78] sm:$0xff] %vm254, %v252
  // Predicated region
  $region14: #{tpu_custom_call.1} parent=0 // pred_check
    _
  $region15: #{tpu_custom_call.1} parent=0 // pred_check_branch
    %272 = sbr.rel (0) target = $region17
  $region16: #{tpu_custom_call.1} parent=0 // pred_region
    _
  $region17: #{tpu_custom_call.1} parent=0 // pred_fallthru
    _
  // Predicated region
  $region18: #{tpu_custom_call.1} parent=0 // pred_check
    _
  $region19: #{tpu_custom_call.1} parent=0 // pred_check_branch
    %274 = sbr.rel (0) target = $region21
  $region20: #{tpu_custom_call.1} parent=0 // pred_region
    _
  $region21: #{tpu_custom_call.1} parent=0 // pred_fallthru
    _

</llo_original>
